<compile_context>
chip_gen: v7x
topology: tpu7x:2x2x1
jax: 0.10.0
libtpu: 0.0.40
codegen_flags: <defaults>
</compile_context>

<pallas_src>
import jax
import jax.numpy as jnp
from jax.experimental import pallas as pl
from jax.experimental.pallas import tpu as pltpu


def _round_up(x, m):
    return (x + m - 1) // m * m


def _cdiv(a, b):
    return -(-a // b)


def _largest_divisor_tile(b8, target):
    """Largest multiple-of-8 divisor of b8 that is <= target (both multiples of 8)."""
    best = 8
    for d in range(8, target + 1, 8):
        if b8 % d == 0:
            best = d
    return best


# ---------------------------------------------------------------------------
# Kernel: one batch tile of the mean_net MLP (2 hidden tanh layers + linear).
#   obs_ref  : (TB, ob_dim)   f32   (cast to bf16 in-kernel for the MXU)
#   w1_ref   : (ob_dim, H)    bf16
#   w2_ref   : (H, H)         bf16
#   w3_ref   : (H, AC_PAD)    bf16  (output features zero-padded to 128 lanes)
#   b_ref    : (3, width)     f32   (b1 / b2 / b3 packed, zero-padded)
#   mean_ref : (TB, ac_dim)   f32   (narrow output: only real columns hit HBM)
# ---------------------------------------------------------------------------
def _mlp_policy_mean_kernel(obs_ref, w1_ref, w2_ref, w3_ref, b_ref, mean_ref):
    h_dim = w1_ref.shape[1]
    ac_dim = mean_ref.shape[1]

    b = b_ref[...]  # single DMA'd buffer holding all three biases (f32)

    x = obs_ref[...].astype(jnp.bfloat16)
    h = jnp.tanh(
        jnp.dot(x, w1_ref[...], preferred_element_type=jnp.float32)
        + b[0:1, :h_dim]
    )
    h = jnp.tanh(
        jnp.dot(h.astype(jnp.bfloat16), w2_ref[...],
                preferred_element_type=jnp.float32)
        + b[1:2, :h_dim]
    )
    mean = jnp.dot(h.astype(jnp.bfloat16), w3_ref[...],
                   preferred_element_type=jnp.float32)        # (TB, AC_PAD)
    # Drop the zero-padded lanes BEFORE the store so only the real ac_dim
    # columns are written back to HBM (the (TB, ac_dim) region is contiguous).
    mean_ref[...] = (mean[:, :ac_dim] + b[2:3, :ac_dim]).astype(mean_ref.dtype)


def prepare_params(params):
    """Convert f32 MLPPolicy params into kernel-ready form (do once, reuse).

    - weights cast to bf16 (MXU-native), f32 accumulation in-kernel
    - output-layer weight lane-padded to a multiple of 128 (lane-aligned MXU N);
      the padding never reaches HBM because the kernel slices before the store
    - b1/b2/b3 packed into a single (3, width) f32 buffer (one DMA descriptor)
    """
    h_dim = params["w1"].shape[1]
    ac_dim = params["w3"].shape[1]
    ac_pad = _round_up(ac_dim, 128)
    width = max(h_dim, ac_pad)

    w3p = jnp.zeros((h_dim, ac_pad), jnp.bfloat16)
    w3p = w3p.at[:, :ac_dim].set(params["w3"].astype(jnp.bfloat16))

    bpack = jnp.zeros((3, width), jnp.float32)
    bpack = bpack.at[0, :h_dim].set(params["b1"].reshape(-1))
    bpack = bpack.at[1, :h_dim].set(params["b2"].reshape(-1))
    bpack = bpack.at[2, :ac_dim].set(params["b3"].reshape(-1))

    return dict(
        w1=params["w1"].astype(jnp.bfloat16),
        w2=params["w2"].astype(jnp.bfloat16),
        w3p=w3p,
        bpack=bpack,
        logstd=params["logstd"],  # (1, ac_dim)
    )


def mlp_policy_forward(obs, kp, *, block_b=1024):
    """Returns (mean, cov_diag) parameterizing
    MultivariateNormal(loc=mean, covariance_matrix=diag(cov_diag)).

    obs: (B, ob_dim) float32.
    kp:  output of prepare_params().
    """
    B, ob_dim = obs.shape
    ac_dim = kp["logstd"].shape[-1]

    # --- batch tiling --------------------------------------------------------
    # Pad B only to a multiple of 8 (<=7 wasted rows) and pick a tile that
    # divides it, so the common case needs no whole-array jnp.pad pass and no
    # row slice afterwards.  Cap the tile so the grid has >=2 steps when the
    # batch is large enough ("parallel" then shards steps across v7x's 2 TCs).
    b8 = _round_up(B, 8)
    target = min(block_b, max(8, _round_up(_cdiv(b8, 2), 8)), b8)
    tb = _largest_divisor_tile(b8, target)
    if b8 // tb > 2 * _cdiv(b8, target):
        # Awkward batch size: an exact-divisor tile would mean many tiny grid
        # steps (~0.35us each); cheaper to pad a few rows up to the target tile.
        tb = target
        b_pad = _round_up(b8, tb)
    else:
        b_pad = b8

    if b_pad != B:
        obs = jnp.pad(obs, ((0, b_pad - B), (0, 0)))

    grid = (b_pad // tb,)
    const2 = lambda i: (0, 0)  # params stay VMEM-resident across grid steps

    mean_out = pl.pallas_call(
        _mlp_policy_mean_kernel,
        out_shape=jax.ShapeDtypeStruct((b_pad, ac_dim), jnp.float32),
        grid_spec=pltpu.PrefetchScalarGridSpec(
            num_scalar_prefetch=0,
            grid=grid,
            in_specs=[
                pl.BlockSpec((tb, ob_dim), lambda i: (i, 0)),   # obs tile (pipelined)
                pl.BlockSpec(kp["w1"].shape, const2),
                pl.BlockSpec(kp["w2"].shape, const2),
                pl.BlockSpec(kp["w3p"].shape, const2),
                pl.BlockSpec(kp["bpack"].shape, const2),
            ],
            # Narrow, lane-exact output block: last dim == full array dim is
            # legal and avoids writing 128-lane padded f32 back to HBM.
            out_specs=pl.BlockSpec((tb, ac_dim), lambda i: (i, 0)),
        ),
        compiler_params=pltpu.CompilerParams(
            dimension_semantics=("parallel",),      # shard grid across v7x TCs
            vmem_limit_bytes=32 * 1024 * 1024,      # portable v5e/v6e/v7x budget
        ),
    )(obs, kp["w1"], kp["w2"], kp["w3p"], kp["bpack"])

    mean = mean_out if b_pad == B else mean_out[:B]
    # Hoisted out of the kernel: obs-independent.  cov_diag = exp(logstd) is
    # the diagonal of covariance_matrix per the original module (NOT scale_tril),
    # so sampling std = sqrt(cov_diag) = exp(logstd / 2).
    cov_diag = jnp.exp(kp["logstd"]).reshape(-1)
    return mean, cov_diag


def init_params(key, ob_dim, ac_dim, layer_size):
    """Deterministic synthetic parameters (n_layers=2 MLP, PyTorch-Linear-like init)."""
    ks = jax.random.split(key, 6)

    def linear(kw, kb, fan_in, fan_out):
        bound = 1.0 / jnp.sqrt(jnp.float32(fan_in))
        w = jax.random.uniform(kw, (fan_in, fan_out), jnp.float32, -bound, bound)
        b = jax.random.uniform(kb, (1, fan_out), jnp.float32, -bound, bound)
        return w, b

    w1, b1 = linear(ks[0], ks[1], ob_dim, layer_size)
    w2, b2 = linear(ks[2], ks[3], layer_size, layer_size)
    w3, b3 = linear(ks[4], ks[5], layer_size, ac_dim)
    logstd = jnp.zeros((1, ac_dim), jnp.float32)  # nn.Parameter(torch.zeros(ac_dim))
    return dict(w1=w1, b1=b1, w2=w2, b2=b2, w3=w3, b3=b3, logstd=logstd)


def reference_forward(obs, p):
    h = jnp.tanh(obs @ p["w1"] + p["b1"])
    h = jnp.tanh(h @ p["w2"] + p["b2"])
    mean = h @ p["w3"] + p["b3"]
    cov_diag = jnp.exp(p["logstd"])
    return mean, cov_diag


if __name__ == "__main__":
    # Small shapes consistent with MLPPolicy(ob_dim=16, ac_dim=4, n_layers=2, layer_size=32)
    B, ob_dim, ac_dim, layer_size = 8, 16, 4, 32

    key = jax.random.PRNGKey(0)
    k_obs, k_par, k_noise, k_obs2 = jax.random.split(key, 4)

    obs = jax.random.normal(k_obs, (B, ob_dim), jnp.float32)
    params = init_params(k_par, ob_dim, ac_dim, layer_size)
    kp = prepare_params(params)

    mean, cov_diag = mlp_policy_forward(obs, kp)
    mean, cov_diag = jax.block_until_ready((mean, cov_diag))

    # forward() returns MultivariateNormal(loc=mean, covariance_matrix=diag(cov_diag));
    # get_action samples it: mean + sqrt(cov_diag) * N(0, I).
    action_sample = mean + jnp.sqrt(cov_diag) * jax.random.normal(
        k_noise, mean.shape, jnp.float32)
    jax.block_until_ready(action_sample)

    # Verify against a pure-JAX f32 reference (bf16 weights -> loosened tol).
    ref_mean, ref_cov = reference_forward(obs, params)
    assert mean.shape == (B, ac_dim) and cov_diag.shape == (ac_dim,)
    assert jnp.allclose(cov_diag, ref_cov.reshape(-1), atol=1e-6, rtol=1e-6), "cov mismatch"
    assert jnp.allclose(mean, ref_mean, atol=5e-2, rtol=5e-2), "mean mismatch"

    # Second check: non-multiple-of-8 batch exercises the pad / multi-step grid path.
    B2 = 37
    obs2 = jax.random.normal(k_obs2, (B2, ob_dim), jnp.float32)
    mean2, _ = mlp_policy_forward(obs2, kp)
    mean2 = jax.block_until_ready(mean2)
    ref_mean2, _ = reference_forward(obs2, params)
    assert mean2.shape == (B2, ac_dim)
    assert jnp.allclose(mean2, ref_mean2, atol=5e-2, rtol=5e-2), "mean mismatch (B=37)"

    # TODO(synk): torch.distributions.MultivariateNormal/Categorical objects have
    # no Pallas equivalent; we return the distribution parameters instead.
    print("KERNEL_OK")
</pallas_src>

<mosaic_0001>
module attributes {stable_mosaic.version = 11 : i64} {
  func.func @_mlp_policy_mean_kernel(%arg0: i32, %arg1: memref<8x16xf32, #tpu.memory_space<vmem>>, %arg2: memref<16x32xbf16, #tpu.memory_space<vmem>>, %arg3: memref<32x32xbf16, #tpu.memory_space<vmem>>, %arg4: memref<32x128xbf16, #tpu.memory_space<vmem>>, %arg5: memref<3x128xf32, #tpu.memory_space<vmem>>, %arg6: memref<8x4xf32, #tpu.memory_space<vmem>>) attributes {dimension_semantics = [#tpu.dimension_semantics<parallel>], iteration_bounds = array<i64: 1>, scalar_prefetch = 0 : i64, scratch_operands = 0 : i64, tpu.core_type = #tpu.core_type<tc>, window_params = [{transform_indices = @transform_0, window_bounds = array<i64: 8, 16>}, {pipeline_mode = #tpu.pipeline_mode<synchronous>, transform_indices = @transform_1, window_bounds = array<i64: 16, 32>}, {pipeline_mode = #tpu.pipeline_mode<synchronous>, transform_indices = @transform_2, window_bounds = array<i64: 32, 32>}, {pipeline_mode = #tpu.pipeline_mode<synchronous>, transform_indices = @transform_3, window_bounds = array<i64: 32, 128>}, {pipeline_mode = #tpu.pipeline_mode<synchronous>, transform_indices = @transform_4, window_bounds = array<i64: 3, 128>}, {transform_indices = @transform_5, window_bounds = array<i64: 8, 4>}]} {
    %c0 = arith.constant 0 : index
    %c0_0 = arith.constant 0 : index
    %0 = vector.load %arg5[%c0, %c0_0] : memref<3x128xf32, #tpu.memory_space<vmem>>, vector<3x128xf32>
    %c0_1 = arith.constant 0 : index
    %c0_2 = arith.constant 0 : index
    %1 = vector.load %arg1[%c0_1, %c0_2] : memref<8x16xf32, #tpu.memory_space<vmem>>, vector<8x16xf32>
    %2 = arith.truncf %1 : vector<8x16xf32> to vector<8x16xbf16>
    %c0_3 = arith.constant 0 : index
    %c0_4 = arith.constant 0 : index
    %3 = vector.load %arg2[%c0_3, %c0_4] : memref<16x32xbf16, #tpu.memory_space<vmem>>, vector<16x32xbf16>
    %cst = arith.constant dense<0.000000e+00> : vector<8x32xf32>
    %4 = tpu.matmul %2, %3, %cst {dimension_numbers = #tpu.dot_dimension_numbers<[1], [0], [0], [1], [0, 0, 1, 1], [], []>} : vector<8x16xbf16>, vector<16x32xbf16>, vector<8x32xf32> -> vector<8x32xf32>
    %5 = vector.extract_strided_slice %0 {offsets = [0, 0], sizes = [1, 32], strides = [1, 1]} : vector<3x128xf32> to vector<1x32xf32>
    %6 = vector.broadcast %5 : vector<1x32xf32> to vector<8x32xf32>
    %7 = arith.addf %4, %6 : vector<8x32xf32>
    %8 = math.tanh %7 : vector<8x32xf32>
    %9 = arith.truncf %8 : vector<8x32xf32> to vector<8x32xbf16>
    %c0_5 = arith.constant 0 : index
    %c0_6 = arith.constant 0 : index
    %10 = vector.load %arg3[%c0_5, %c0_6] : memref<32x32xbf16, #tpu.memory_space<vmem>>, vector<32x32xbf16>
    %cst_7 = arith.constant dense<0.000000e+00> : vector<8x32xf32>
    %11 = tpu.matmul %9, %10, %cst_7 {dimension_numbers = #tpu.dot_dimension_numbers<[1], [0], [0], [1], [0, 0, 1, 1], [], []>} : vector<8x32xbf16>, vector<32x32xbf16>, vector<8x32xf32> -> vector<8x32xf32>
    %12 = vector.extract_strided_slice %0 {offsets = [1, 0], sizes = [1, 32], strides = [1, 1]} : vector<3x128xf32> to vector<1x32xf32>
    %13 = vector.broadcast %12 : vector<1x32xf32> to vector<8x32xf32>
    %14 = arith.addf %11, %13 : vector<8x32xf32>
    %15 = math.tanh %14 : vector<8x32xf32>
    %16 = arith.truncf %15 : vector<8x32xf32> to vector<8x32xbf16>
    %c0_8 = arith.constant 0 : index
    %c0_9 = arith.constant 0 : index
    %17 = vector.load %arg4[%c0_8, %c0_9] : memref<32x128xbf16, #tpu.memory_space<vmem>>, vector<32x128xbf16>
    %cst_10 = arith.constant dense<0.000000e+00> : vector<8x128xf32>
    %18 = tpu.matmul %16, %17, %cst_10 {dimension_numbers = #tpu.dot_dimension_numbers<[1], [0], [0], [1], [0, 0, 1, 1], [], []>} : vector<8x32xbf16>, vector<32x128xbf16>, vector<8x128xf32> -> vector<8x128xf32>
    %19 = vector.extract_strided_slice %18 {offsets = [0, 0], sizes = [8, 4], strides = [1, 1]} : vector<8x128xf32> to vector<8x4xf32>
    %20 = vector.extract_strided_slice %0 {offsets = [2, 0], sizes = [1, 4], strides = [1, 1]} : vector<3x128xf32> to vector<1x4xf32>
    %21 = vector.broadcast %20 : vector<1x4xf32> to vector<8x4xf32>
    %22 = arith.addf %19, %21 : vector<8x4xf32>
    %c0_11 = arith.constant 0 : index
    %c0_12 = arith.constant 0 : index
    %23 = vector.load %arg6[%c0_11, %c0_12] : memref<8x4xf32, #tpu.memory_space<vmem>>, vector<8x4xf32>
    tpu.vector_store %arg6[%c0_11, %c0_12], %22 {strides = array<i32>} : memref<8x4xf32, #tpu.memory_space<vmem>>, vector<8x4xf32>,
    return
  }
  func.func @transform_0(%arg0: i32) -> (i32, i32) {
    %c0_i32 = arith.constant 0 : i32
    %c0_i32_0 = arith.constant 0 : i32
    return %arg0, %c0_i32 : i32, i32
  }
  func.func @transform_1(%arg0: i32) -> (i32, i32) {
    %c0_i32 = arith.constant 0 : i32
    %c0_i32_0 = arith.constant 0 : i32
    %c0_i32_1 = arith.constant 0 : i32
    return %c0_i32, %c0_i32_0 : i32, i32
  }
  func.func @transform_2(%arg0: i32) -> (i32, i32) {
    %c0_i32 = arith.constant 0 : i32
    %c0_i32_0 = arith.constant 0 : i32
    %c0_i32_1 = arith.constant 0 : i32
    return %c0_i32, %c0_i32_0 : i32, i32
  }
  func.func @transform_3(%arg0: i32) -> (i32, i32) {
    %c0_i32 = arith.constant 0 : i32
    %c0_i32_0 = arith.constant 0 : i32
    %c0_i32_1 = arith.constant 0 : i32
    return %c0_i32, %c0_i32_0 : i32, i32
  }
  func.func @transform_4(%arg0: i32) -> (i32, i32) {
    %c0_i32 = arith.constant 0 : i32
    %c0_i32_0 = arith.constant 0 : i32
    %c0_i32_1 = arith.constant 0 : i32
    return %c0_i32, %c0_i32_0 : i32, i32
  }
  func.func @transform_5(%arg0: i32) -> (i32, i32) {
    %c0_i32 = arith.constant 0 : i32
    %c0_i32_0 = arith.constant 0 : i32
    return %arg0, %c0_i32 : i32, i32
  }
}

</mosaic_0001>

<llo_original>
// kernel: tpu_custom_call.1
$region0: #{tpu_custom_call.1}
  #allocation0 [shape = 'u32[]', space=smem, size = 0x4, offset = 0x4, fixed_abs, tag = 'smem constant byte address 0x4 - core index']
  #allocation1 [shape = 'u32[144,128]{1,0:T(1,128)}', space=vmem, size = 0x12000, scoped, tag = 'internal scratch']
  %s0 = inlined_call_operand.hbm [shape: f32[8,16], index: 0, kind: input, shape index: {}]
  %s1 = inlined_call_operand.hbm [shape: bf16[16,32], index: 1, kind: input, shape index: {}]
  %s2 = inlined_call_operand.hbm [shape: bf16[32,32], index: 2, kind: input, shape index: {}]
  %s3 = inlined_call_operand.hbm [shape: bf16[32,128], index: 3, kind: input, shape index: {}]
  %s4 = inlined_call_operand.vmem [shape: f32[3,128], index: 4, kind: input, shape index: {}]
  %s5 = inlined_call_operand.vmem [shape: f32[8,4], index: 5, kind: output, shape index: {}]
  %s6 = sld [smem:[#allocation0]]
  $region46: #{tpu_custom_call.1} parent=0
    _
  %s8 = ssub.s32 1, %s6
  %s9 = scalar_select 0, %s8, %s6
  $region1: #{tpu_custom_call.1} parent=0
    #allocation2 [shape = 'u8[4096]{0}', space=vmem, size = 0x1000, scoped, tag = 'input window, operand 0, single buffered']
    #allocation3 [shape = 's32[1]{0}', space=sflag, size = 0x4, scoped, tag = 'scoped memory for tpu_custom_call.1']
    #allocation4 [shape = 'u8[4096]{0}', space=vmem, size = 0x1000, scoped, tag = 'input window, operand 1, single buffered']
    #allocation5 [shape = 's32[1]{0}', space=sflag, size = 0x4, scoped, tag = 'scoped memory for tpu_custom_call.1']
    #allocation6 [shape = 'u8[8192]{0}', space=vmem, size = 0x2000, scoped, tag = 'input window, operand 2, single buffered']
    #allocation7 [shape = 'u8[8192]{0}', space=vmem, size = 0x2000, scoped, tag = 'input window, operand 3, single buffered']
    #allocation8 [shape = 's32[1]{0}', space=sflag, size = 0x4, scoped, tag = 'scoped memory for tpu_custom_call.1']
    %10 = vsyncpa [#allocation3], 0
    %11 = vsyncpa [#allocation5], 0
    %12 = vsyncpa [#allocation8], 0
    // Predicated region
    $region2: #{tpu_custom_call.1} parent=1 // pred_check
      _
    $region3: #{tpu_custom_call.1} parent=1 // pred_check_branch
      %14 = sbr.rel (0) target = $region5
    $region4: #{tpu_custom_call.1} parent=1 // pred_region
      %s16 = ssub.s32 128, 128
      %17 = vsyncadd [#allocation3], %s16
      %s19 = sshll.u32 [#allocation2], 4
      %s20 = int_to_ptr.vmem [resolvable:$true] %s19
      %22 = dma.hbm_to_vmem [thread:$0]  %s0, 128, %s20, [#allocation3]
    $region5: #{tpu_custom_call.1} parent=1 // pred_fallthru
      _
    // Predicated region
    $region6: #{tpu_custom_call.1} parent=1 // pred_check
      _
    $region7: #{tpu_custom_call.1} parent=1 // pred_check_branch
      %24 = sbr.rel (0) target = $region9
    $region8: #{tpu_custom_call.1} parent=1 // pred_region
      %s26 = ssub.s32 128, 128
      %27 = vsyncadd [#allocation5], %s26
      %s28 = sshll.u32 [#allocation4], 4
      %s29 = int_to_ptr.vmem [resolvable:$true] %s28
      %34 = dma.hbm_to_vmem [thread:$0]  %s1, 128, %s29, [#allocation5], 64, 64, 4
    $region9: #{tpu_custom_call.1} parent=1 // pred_fallthru
      _
    // Predicated region
    $region10: #{tpu_custom_call.1} parent=1 // pred_check
      _
    $region11: #{tpu_custom_call.1} parent=1 // pred_check_branch
      %36 = sbr.rel (0) target = $region13
    $region12: #{tpu_custom_call.1} parent=1 // pred_region
      %s38 = ssub.s32 256, 256
      %39 = vsyncadd [#allocation5], %s38
      %s40 = sshll.u32 [#allocation6], 4
      %s41 = int_to_ptr.vmem [resolvable:$true] %s40
      %46 = dma.hbm_to_vmem [thread:$0]  %s2, 256, %s41, [#allocation5], 64, 64, 4
    $region13: #{tpu_custom_call.1} parent=1 // pred_fallthru
      _
    // Predicated region
    $region14: #{tpu_custom_call.1} parent=1 // pred_check
      _
    $region15: #{tpu_custom_call.1} parent=1 // pred_check_branch
      %48 = sbr.rel (0) target = $region17
    $region16: #{tpu_custom_call.1} parent=1 // pred_region
      %s50 = ssub.s32 256, 256
      %51 = vsyncadd [#allocation8], %s50
      %s52 = sshll.u32 [#allocation7], 4
      %s53 = int_to_ptr.vmem [resolvable:$true] %s52
      %58 = dma.hbm_to_vmem [thread:$0]  %s3, 256, %s53, [#allocation8], 64, 64, 4
    $region17: #{tpu_custom_call.1} parent=1 // pred_fallthru
      _
    // Predicated region
    $region18: #{tpu_custom_call.1} parent=1 // pred_check
      _
    $region19: #{tpu_custom_call.1} parent=1 // pred_check_branch
      %60 = sbr.rel (0) target = $region21
    $region20: #{tpu_custom_call.1} parent=1 // pred_region
      _
    $region21: #{tpu_custom_call.1} parent=1 // pred_fallthru
      _
    // Predicated region
    $region22: #{tpu_custom_call.1} parent=1 // pred_check
      _
    $region23: #{tpu_custom_call.1} parent=1 // pred_check_branch
      %62 = sbr.rel (0) target = $region25
    $region24: #{tpu_custom_call.1} parent=1 // pred_region
      %63 = dma.done [#allocation3], 128
    $region25: #{tpu_custom_call.1} parent=1 // pred_fallthru
      _
    // Predicated region
    $region26: #{tpu_custom_call.1} parent=1 // pred_check
      _
    $region27: #{tpu_custom_call.1} parent=1 // pred_check_branch
      %65 = sbr.rel (0) target = $region29
    $region28: #{tpu_custom_call.1} parent=1 // pred_region
      %66 = dma.done [#allocation5], 128
    $region29: #{tpu_custom_call.1} parent=1 // pred_fallthru
      _
    // Predicated region
    $region30: #{tpu_custom_call.1} parent=1 // pred_check
      _
    $region31: #{tpu_custom_call.1} parent=1 // pred_check_branch
      %68 = sbr.rel (0) target = $region33
    $region32: #{tpu_custom_call.1} parent=1 // pred_region
      %69 = dma.done [#allocation5], 256
    $region33: #{tpu_custom_call.1} parent=1 // pred_fallthru
      _
    // Predicated region
    $region34: #{tpu_custom_call.1} parent=1 // pred_check
      _
    $region35: #{tpu_custom_call.1} parent=1 // pred_check_branch
      %71 = sbr.rel (0) target = $region37
    $region36: #{tpu_custom_call.1} parent=1 // pred_region
      %72 = dma.done [#allocation8], 256
    $region37: #{tpu_custom_call.1} parent=1 // pred_fallthru
      _
    %v74 = vld [vmem:[%s4] sm:$0x7]
    %v75 = vld [vmem:[#allocation2] sm:$0xff]
    %v76 = vpack.c.bf16 %v75, %v75
    %v77 = vld [vmem:[#allocation4] sm:$0xf]
    %v78 = vld [vmem:[#allocation4 + $0x4] sm:$0xf]
    %v79 = vlaneseq
    %v80 = vshrl.u32 %v79, 7
    %v81 = vsub.s32 0, %v80
    %v82 = vrot.slane %v74, %v81
    %v85 = vunpack.c.l.b16 %v77
    %v86 = vunpack.c.l.b16 %v78
    %v87 = vpack.c.b16 %v86, %v85
    %vm89 = vcmask 130048
    %v91 = vsel %vm89, %v76, 0
    %93 = vmatprep.subr.bf16.mxu0 0
    %94 = vmatpush1.bf16.msra.mxu0 %v87
    %95 = vmatprep.subr.bf16.mxu0 0
    %96 = vmatpush1.bf16.msra.mxu0 0
    %97 = vmatprep.subr.bf16.mxu0 0
    %98 = vmatpush1.bf16.msra.mxu0 0
    %99 = vmatprep.subr.bf16.mxu0 0
    %100 = vmatpush1.bf16.msra.mxu0 0
    %101 = vmatprep.subr.bf16.mxu0 0
    %102 = vmatpush1.bf16.msra.mxu0 0
    %103 = vmatprep.subr.bf16.mxu0 0
    %104 = vmatpush1.bf16.msra.mxu0 0
    %105 = vmatprep.subr.bf16.mxu0 0
    %106 = vmatpush1.bf16.msra.mxu0 0
    %107 = vmatprep.subr.bf16.mxu0 0
    %108 = vmatpush1.bf16.msra.mxu0 0
    %109 = vmatprep.subr.bf16.mxu0 0
    %110 = vmatpush1.bf16.msra.mxu0 0
    %111 = vmatprep.subr.bf16.mxu0 0
    %112 = vmatpush1.bf16.msra.mxu0 0
    %113 = vmatprep.subr.bf16.mxu0 0
    %114 = vmatpush1.bf16.msra.mxu0 0
    %115 = vmatprep.subr.bf16.mxu0 0
    %116 = vmatpush1.bf16.msra.mxu0 0
    %117 = vmatprep.subr.bf16.mxu0 0
    %118 = vmatpush1.bf16.msra.mxu0 0
    %119 = vmatprep.subr.bf16.mxu0 0
    %120 = vmatpush1.bf16.msra.mxu0 0
    %121 = vmatprep.subr.bf16.mxu0 0
    %122 = vmatpush1.bf16.msra.mxu0 0
    %123 = vmatprep.subr.bf16.mxu0 0
    %124 = vmatpush1.bf16.msra.mxu0 0
    %125 = vmatprep.mubr.bf16.mxu0 0
    %126 = vmatmul.mubr.bf16.gmra.mrb[0].mxu0 %v91
    %v127 = vpop.f32.mrb[0].mxu0
    %v128 = vadd.f32 %v82, %v127
    %v129 = vpop.f32.mrb[0].mxu0
    %v130 = vpop.f32.mrb[0].mxu0
    %v131 = vpop.f32.mrb[0].mxu0
    %132 = vdwg.mxu0
    %v133 = vtanh.pop %v128
    %v134 = vpack.c.bf16 %v133, %v133
    %v135 = vld [vmem:[#allocation6] sm:$0xf]
    %v136 = vld [vmem:[#allocation6 + $0x4] sm:$0xf]
    %v137 = vld [vmem:[#allocation6 + $0x8] sm:$0xf]
    %v138 = vld [vmem:[#allocation6 + $0xc] sm:$0xf]
    %v139 = vlaneseq
    %v140 = vshrl.u32 %v139, 7
    %v141 = vsub.s32 1, %v140
    %v142 = vrot.slane %v74, %v141
    %v147 = vunpack.c.l.b16 %v135
    %v148 = vunpack.c.l.b16 %v136
    %v149 = vunpack.c.l.b16 %v137
    %v150 = vunpack.c.l.b16 %v138
    %v151 = vpack.c.b16 %v148, %v147
    %v152 = vpack.c.b16 %v150, %v149
    %vm155 = vcmask 261120
    %v157 = vsel %vm155, %v134, 0
    %159 = vmatprep.subr.bf16.mxu0 0
    %160 = vmatpush1.bf16.msra.mxu0 %v151
    %161 = vmatprep.subr.bf16.mxu0 0
    %162 = vmatpush1.bf16.msra.mxu0 %v152
    %163 = vmatprep.subr.bf16.mxu0 0
    %164 = vmatpush1.bf16.msra.mxu0 0
    %165 = vmatprep.subr.bf16.mxu0 0
    %166 = vmatpush1.bf16.msra.mxu0 0
    %167 = vmatprep.subr.bf16.mxu0 0
    %168 = vmatpush1.bf16.msra.mxu0 0
    %169 = vmatprep.subr.bf16.mxu0 0
    %170 = vmatpush1.bf16.msra.mxu0 0
    %171 = vmatprep.subr.bf16.mxu0 0
    %172 = vmatpush1.bf16.msra.mxu0 0
    %173 = vmatprep.subr.bf16.mxu0 0
    %174 = vmatpush1.bf16.msra.mxu0 0
    %175 = vmatprep.subr.bf16.mxu0 0
    %176 = vmatpush1.bf16.msra.mxu0 0
    %177 = vmatprep.subr.bf16.mxu0 0
    %178 = vmatpush1.bf16.msra.mxu0 0
    %179 = vmatprep.subr.bf16.mxu0 0
    %180 = vmatpush1.bf16.msra.mxu0 0
    %181 = vmatprep.subr.bf16.mxu0 0
    %182 = vmatpush1.bf16.msra.mxu0 0
    %183 = vmatprep.subr.bf16.mxu0 0
    %184 = vmatpush1.bf16.msra.mxu0 0
    %185 = vmatprep.subr.bf16.mxu0 0
    %186 = vmatpush1.bf16.msra.mxu0 0
    %187 = vmatprep.subr.bf16.mxu0 0
    %188 = vmatpush1.bf16.msra.mxu0 0
    %189 = vmatprep.subr.bf16.mxu0 0
    %190 = vmatpush1.bf16.msra.mxu0 0
    %191 = vmatprep.mubr.bf16.mxu0 0
    %192 = vmatmul.mubr.bf16.gmra.mrb[0].mxu0 %v157
    %v193 = vpop.f32.mrb[0].mxu0
    %v194 = vadd.f32 %v142, %v193
    %v195 = vpop.f32.mrb[0].mxu0
    %v196 = vpop.f32.mrb[0].mxu0
    %v197 = vpop.f32.mrb[0].mxu0
    %198 = vdwg.mxu0
    %v199 = vtanh.pop %v194
    %v200 = vpack.c.bf16 %v199, %v199
    %v201 = vld [vmem:[#allocation7] sm:$0xf]
    %v202 = vld [vmem:[#allocation7 + $0x4] sm:$0xf]
    %v203 = vld [vmem:[#allocation7 + $0x8] sm:$0xf]
    %v204 = vld [vmem:[#allocation7 + $0xc] sm:$0xf]
    %v209 = vunpack.c.l.b16 %v201
    %v210 = vunpack.c.l.b16 %v202
    %v211 = vunpack.c.l.b16 %v203
    %v212 = vunpack.c.l.b16 %v204
    %v213 = vpack.c.b16 %v210, %v209
    %v214 = vpack.c.b16 %v212, %v211
    %v218 = vsel %vm155, %v200, 0
    %220 = vmatprep.subr.bf16.mxu0 0
    %221 = vmatpush1.bf16.msra.mxu0 %v213
    %222 = vmatprep.subr.bf16.mxu0 0
    %223 = vmatpush1.bf16.msra.mxu0 %v214
    %224 = vmatprep.subr.bf16.mxu0 0
    %225 = vmatpush1.bf16.msra.mxu0 0
    %226 = vmatprep.subr.bf16.mxu0 0
    %227 = vmatpush1.bf16.msra.mxu0 0
    %228 = vmatprep.subr.bf16.mxu0 0
    %229 = vmatpush1.bf16.msra.mxu0 0
    %230 = vmatprep.subr.bf16.mxu0 0
    %231 = vmatpush1.bf16.msra.mxu0 0
    %232 = vmatprep.subr.bf16.mxu0 0
    %233 = vmatpush1.bf16.msra.mxu0 0
    %234 = vmatprep.subr.bf16.mxu0 0
    %235 = vmatpush1.bf16.msra.mxu0 0
    %236 = vmatprep.subr.bf16.mxu0 0
    %237 = vmatpush1.bf16.msra.mxu0 0
    %238 = vmatprep.subr.bf16.mxu0 0
    %239 = vmatpush1.bf16.msra.mxu0 0
    %240 = vmatprep.subr.bf16.mxu0 0
    %241 = vmatpush1.bf16.msra.mxu0 0
    %242 = vmatprep.subr.bf16.mxu0 0
    %243 = vmatpush1.bf16.msra.mxu0 0
    %244 = vmatprep.subr.bf16.mxu0 0
    %245 = vmatpush1.bf16.msra.mxu0 0
    %246 = vmatprep.subr.bf16.mxu0 0
    %247 = vmatpush1.bf16.msra.mxu0 0
    %248 = vmatprep.subr.bf16.mxu0 0
    %249 = vmatpush1.bf16.msra.mxu0 0
    %250 = vmatprep.subr.bf16.mxu0 0
    %251 = vmatpush1.bf16.msra.mxu0 0
    %252 = vmatprep.mubr.bf16.mxu0 0
    %253 = vmatmul.mubr.bf16.gmra.mrb[0].mxu0 %v218
    %v254 = vpop.f32.mrb[0].mxu0
    %v255 = vadd.f32 0.0, %v254
    %v256 = vpop.f32.mrb[0].mxu0
    %v257 = vpop.f32.mrb[0].mxu0
    %v258 = vpop.f32.mrb[0].mxu0
    %259 = vdwg.mxu0
    %v260 = vlaneseq
    %v261 = vshrl.u32 %v260, 7
    %v262 = vsub.s32 2, %v261
    %v263 = vrot.slane %v74, %v262
    %v264 = vadd.f32 %v255, %v263
    %vm265 = vcmask 31744
    %266 = vst.msk [vmem:[%s5] sm:$0xff] %vm265, %v264
    // Predicated region
    $region38: #{tpu_custom_call.1} parent=1 // pred_check
      _
    $region39: #{tpu_custom_call.1} parent=1 // pred_check_branch
      %268 = sbr.rel (0) target = $region41
    $region40: #{tpu_custom_call.1} parent=1 // pred_region
      _
    $region41: #{tpu_custom_call.1} parent=1 // pred_fallthru
      _
    // Predicated region
    $region42: #{tpu_custom_call.1} parent=1 // pred_check
      _
    $region43: #{tpu_custom_call.1} parent=1 // pred_check_branch
      %270 = sbr.rel (0) target = $region45
    $region44: #{tpu_custom_call.1} parent=1 // pred_region
      _
    $region45: #{tpu_custom_call.1} parent=1 // pred_fallthru
      _
    %271 = vsyncpa [#allocation3], 1
    %272 = vsyncpa [#allocation5], 1
    %273 = vsyncpa [#allocation8], 1

</llo_original>
